<compile_context>
chip_gen: v5e
topology: v5e:2x2
jax: 0.10.0
libtpu: 0.0.40
codegen_flags: <defaults>
</compile_context>

<pallas_src>
import functools

import jax
import jax.numpy as jnp
from jax.experimental import pallas as pl
from jax.experimental.pallas import tpu as pltpu

_I32_MIN = int(jnp.iinfo(jnp.int32).min)   # vocab padding sentinel
_QUERY_PAD = _I32_MIN + 1                  # query padding sentinel (sliced off)


def _round_up(x: int, m: int) -> int:
    return ((x + m - 1) // m) * m


def _names_to_indices_kernel(names_ref, vocab_ref, out_ref, *, chunk: int, unroll):
    c = pl.program_id(0)          # core-split axis (parallel)
    k = pl.program_id(2)          # V reduction step (arbitrary, last)
    nkv = pl.num_programs(2)

    # Running-max accumulator: the output block is revisited across the k axis.
    @pl.when(k == 0)
    def _():
        out_ref[...] = jnp.full_like(out_ref, -1)

    names = names_ref[...]        # (1, TN) int32, queries on lanes
    tv = vocab_ref.shape[0]
    n_chunks = tv // chunk

    # Hoisted per-chunk local row index (chunk, 1); the global V offset is
    # folded onto the (1, TN) per-chunk result instead of the index column.
    local_iota = jax.lax.broadcasted_iota(jnp.int32, (chunk, 1), 0)
    tile_base = (c * nkv + k) * tv            # first vocab row of this tile

    def body(ci, running):                    # running: (1, TN) int32
        off = pl.multiple_of(ci * chunk, chunk)
        vchunk = vocab_ref[pl.ds(off, chunk), :]                  # (chunk, 1)
        eq = vchunk == names                                      # (chunk, TN)
        matched = jnp.where(eq, local_iota, jnp.int32(-1))        # (chunk, TN)
        best = jnp.max(matched, axis=0, keepdims=True)            # (1, TN)
        best = jnp.where(best >= 0, best + (tile_base + off), jnp.int32(-1))
        return jnp.maximum(running, best)

    out_ref[...] = jax.lax.fori_loop(0, n_chunks, body, out_ref[...],
                                     unroll=unroll)


def _names_to_indices_ref(names_ids: jax.Array, vocab_ids: jax.Array) -> jax.Array:
    """Plain-XLA reference / small-problem fast path (identical semantics)."""
    V = vocab_ids.shape[0]
    eq = names_ids[:, None].astype(jnp.int32) == vocab_ids[None, :].astype(jnp.int32)
    idx = jnp.where(eq, jnp.arange(V, dtype=jnp.int32)[None, :], jnp.int32(-1))
    return jnp.max(idx, axis=1)


def names_to_indices_pallas(names_ids: jax.Array, vocab_ids: jax.Array, *,
                            tn: int = 1024, tv: int = 2048, chunk: int = 256,
                            force_pallas: bool = False) -> jax.Array:
    """names_ids: (N,) int32 query name ids; vocab_ids: (V,) int32 idx->name ids.

    Returns (N,) int32 indices into the vocabulary ("last duplicate wins");
    -1 where a name is not found (the PyTorch module would raise KeyError).
    Name ids must not equal INT32_MIN (reserved as the vocab padding sentinel).
    """
    N = int(names_ids.shape[0])
    V = int(vocab_ids.shape[0])

    # Small-problem fast path: pallas_call launch + padding overhead dominates.
    if not force_pallas and N * V < (1 << 20):
        return _names_to_indices_ref(names_ids, vocab_ids)

    # Lane-dense query tile (multiple of 128); sublane vocab tile (multiple of
    # 8), walked in `chunk`-row sub-chunks inside the kernel body.
    TN = min(tn, _round_up(N, 128))
    TV = min(tv, _round_up(V, 8))
    chunk = min(chunk, TV)
    TV = _round_up(TV, chunk)
    n_chunks = TV // chunk

    N_pad = _round_up(N, TN)
    n_tiles = N_pad // TN

    # Give v7x's second TensorCore work when the query axis has a single tile
    # but the vocab spans several tiles; degenerates to NC=1 otherwise
    # (near-zero cost on single-TC v5e/v6e).
    NC = 2 if (n_tiles == 1 and pl.cdiv(V, TV) >= 2) else 1
    V_pad = _round_up(V, NC * TV)
    kv = V_pad // (NC * TV)

    names_p = jnp.full((1, N_pad), _QUERY_PAD, dtype=jnp.int32)
    names_p = names_p.at[0, :N].set(names_ids.astype(jnp.int32))
    vocab_p = jnp.full((V_pad, 1), _I32_MIN, dtype=jnp.int32)
    vocab_p = vocab_p.at[:V, 0].set(vocab_ids.astype(jnp.int32))

    kernel = functools.partial(_names_to_indices_kernel, chunk=chunk,
                               unroll=True if n_chunks <= 8 else False)

    partial_out = pl.pallas_call(
        kernel,
        out_shape=jax.ShapeDtypeStruct((NC, 1, N_pad), jnp.int32),
        grid_spec=pltpu.PrefetchScalarGridSpec(
            num_scalar_prefetch=0,
            grid=(NC, n_tiles, kv),
            in_specs=[
                pl.BlockSpec((1, TN), lambda c, i, k: (0, i)),            # queries
                pl.BlockSpec((TV, 1), lambda c, i, k: (c * kv + k, 0)),   # vocab
            ],
            out_specs=pl.BlockSpec((None, 1, TN), lambda c, i, k: (c, 0, i)),
        ),
        compiler_params=pltpu.CompilerParams(
            dimension_semantics=("parallel", "parallel", "arbitrary"),
            vmem_limit_bytes=32 * 1024 * 1024,
        ),
    )(names_p, vocab_p)

    # Combine the NC partial maxima (no-op for NC == 1) and drop padding.
    return jnp.max(partial_out, axis=0)[0, :N]


if __name__ == "__main__":
    # --- Demo 1: string names, tiny shapes (forces the Pallas path). ---------
    # idx_to_name mapping (module __init__ argument).  idx 15 duplicates the
    # name at idx 3 to lock in "last duplicate wins" dict-inversion semantics.
    name_pool = [f"class_{chr(ord('a') + i)}" for i in range(15)] + ["class_d"]
    idx_to_name = {i: name_pool[i] for i in range(len(name_pool))}

    # Tokenize names -> int32 ids deterministically (string handling host-side).
    name_to_token = {name: tok for tok, name in enumerate(sorted(set(name_pool)))}
    vocab_ids = jnp.asarray(
        [name_to_token[idx_to_name[i]] for i in range(len(idx_to_name))],
        dtype=jnp.int32)                                        # (V,) = (16,)

    key = jax.random.PRNGKey(0)
    k0, k1, k2 = jax.random.split(key, 3)
    query_positions = jax.random.randint(k0, (8,), 0, len(name_pool))
    query_names = [idx_to_name[int(p)] for p in query_positions]     # module input
    names_ids = jnp.asarray([name_to_token[n] for n in query_names], dtype=jnp.int32)

    got = jax.block_until_ready(
        names_to_indices_pallas(names_ids, vocab_ids, force_pallas=True))

    name_to_idx = {v: k for k, v in idx_to_name.items()}             # dict inversion
    expected = [name_to_idx[n] for n in query_names]
    assert [int(i) for i in got] == expected, (list(map(int, got)), expected)

    # Auto path (tiny -> plain-XLA fast path) must agree.
    got_fast = jax.block_until_ready(names_to_indices_pallas(names_ids, vocab_ids))
    assert [int(i) for i in got_fast] == expected

    # --- Demo 2: vocab-heavy shape exercising multi-step V reduction, padding
    # and the size-2 core-split axis (grid = (2, 1, 2)). ----------------------
    V2, N2 = 5000, 64
    vocab2 = jax.random.randint(k1, (V2,), 0, 100000, dtype=jnp.int32)
    picks = jax.random.randint(k2, (N2,), 0, V2)
    names2 = vocab2[picks]
    got2 = jax.block_until_ready(
        names_to_indices_pallas(names2, vocab2, force_pallas=True))
    want2 = _names_to_indices_ref(names2, vocab2)
    assert bool(jnp.all(got2 == want2)), "large-vocab Pallas path mismatch"

    print("KERNEL_OK")
</pallas_src>

<mosaic_0001>
module attributes {stable_mosaic.version = 11 : i64} {
  func.func @_names_to_indices_kernel(%arg0: i32, %arg1: i32, %arg2: i32, %arg3: memref<1x128xi32, #tpu.memory_space<vmem>>, %arg4: memref<16x1xi32, #tpu.memory_space<vmem>>, %arg5: memref<1x1x128xi32, #tpu.memory_space<vmem>>) attributes {dimension_semantics = [#tpu.dimension_semantics<parallel>, #tpu.dimension_semantics<parallel>, #tpu.dimension_semantics<arbitrary>], iteration_bounds = array<i64: 1, 1, 1>, scalar_prefetch = 0 : i64, scratch_operands = 0 : i64, tpu.core_type = #tpu.core_type<tc>, window_params = [{transform_indices = @transform_0, window_bounds = array<i64: 1, 128>}, {transform_indices = @transform_1, window_bounds = array<i64: 16, 1>}, {transform_indices = @transform_2, window_bounds = array<i64: 1, 1, 128>}]} {
    %c0_i32 = arith.constant 0 : i32
    %0 = arith.cmpi eq, %arg2, %c0_i32 : i32
    %1 = arith.extui %0 : i1 to i32
    %c0_i32_0 = arith.constant 0 : i32
    %2 = arith.cmpi ne, %1, %c0_i32_0 : i32
    scf.if %2 {
      %c-1_i32_14 = arith.constant -1 : i32
      %34 = vector.broadcast %c-1_i32_14 : i32 to vector<1x128xi32>
      %c0_15 = arith.constant 0 : index
      %c0_16 = arith.constant 0 : index
      %c0_17 = arith.constant 0 : index
      %35 = vector.load %arg5[%c0_15, %c0_16, %c0_17] : memref<1x1x128xi32, #tpu.memory_space<vmem>>, vector<1x1x128xi32>
      %36 = vector.shape_cast %35 : vector<1x1x128xi32> to vector<1x128xi32>
      %37 = vector.shape_cast %34 : vector<1x128xi32> to vector<1x1x128xi32>
      tpu.vector_store %arg5[%c0_15, %c0_16, %c0_17], %37 {strides = array<i32>} : memref<1x1x128xi32, #tpu.memory_space<vmem>>, vector<1x1x128xi32>,
    } else {
    }
    %c0 = arith.constant 0 : index
    %c0_1 = arith.constant 0 : index
    %3 = vector.load %arg3[%c0, %c0_1] : memref<1x128xi32, #tpu.memory_space<vmem>>, vector<1x128xi32>
    %4 = tpu.iota {dimensions = array<i32: 0>} : vector<16x1xi32>
    %c1_i32 = arith.constant 1 : i32
    %5 = arith.muli %arg0, %c1_i32 : i32
    %6 = arith.addi %5, %arg2 : i32
    %c16_i32 = arith.constant 16 : i32
    %7 = arith.muli %6, %c16_i32 : i32
    %c0_2 = arith.constant 0 : index
    %c0_3 = arith.constant 0 : index
    %c0_4 = arith.constant 0 : index
    %8 = vector.load %arg5[%c0_2, %c0_3, %c0_4] : memref<1x1x128xi32, #tpu.memory_space<vmem>>, vector<1x1x128xi32>
    %9 = vector.shape_cast %8 : vector<1x1x128xi32> to vector<1x128xi32>
    %c0_i32_5 = arith.constant 0 : i32
    %c16_i32_6 = arith.constant 16 : i32
    %10 = arith.muli %c0_i32_5, %c16_i32_6 : i32
    %11 = tpu.assume_multiple %10, 16 : i32
    %12 = arith.index_cast %11 : i32 to index
    %c0_7 = arith.constant 0 : index
    %13 = vector.load %arg4[%12, %c0_7] : memref<16x1xi32, #tpu.memory_space<vmem>>, vector<16x1xi32>
    %14 = vector.broadcast %13 : vector<16x1xi32> to vector<16x128xi32>
    %15 = vector.broadcast %3 : vector<1x128xi32> to vector<16x128xi32>
    %16 = arith.cmpi eq, %14, %15 : vector<16x128xi32>
    %c-1_i32 = arith.constant -1 : i32
    %17 = vector.shape_cast %4 : vector<16x1xi32> to vector<16x1xi32>
    %18 = vector.broadcast %17 : vector<16x1xi32> to vector<16x128xi32>
    %19 = vector.broadcast %c-1_i32 : i32 to vector<16x128xi32>
    %20 = arith.select %16, %18, %19 : vector<16x128xi1>, vector<16x128xi32>
    %cst = arith.constant dense<-2147483648> : vector<128xi32>
    %21 = vector.multi_reduction <maxsi>, %20, %cst [0] : vector<16x128xi32> to vector<128xi32>
    %22 = vector.shape_cast %21 : vector<128xi32> to vector<1x128xi32>
    %c0_i32_8 = arith.constant 0 : i32
    %23 = vector.broadcast %c0_i32_8 : i32 to vector<1x128xi32>
    %24 = arith.cmpi sge, %22, %23 : vector<1x128xi32>
    %25 = arith.addi %7, %11 : i32
    %26 = vector.broadcast %25 : i32 to vector<1x128xi32>
    %27 = arith.addi %22, %26 : vector<1x128xi32>
    %c-1_i32_9 = arith.constant -1 : i32
    %28 = vector.broadcast %c-1_i32_9 : i32 to vector<1x128xi32>
    %29 = arith.select %24, %27, %28 : vector<1x128xi1>, vector<1x128xi32>
    %30 = arith.maxsi %9, %29 : vector<1x128xi32>
    %c1_i32_10 = arith.constant 1 : i32
    %c0_11 = arith.constant 0 : index
    %c0_12 = arith.constant 0 : index
    %c0_13 = arith.constant 0 : index
    %31 = vector.load %arg5[%c0_11, %c0_12, %c0_13] : memref<1x1x128xi32, #tpu.memory_space<vmem>>, vector<1x1x128xi32>
    %32 = vector.shape_cast %31 : vector<1x1x128xi32> to vector<1x128xi32>
    %33 = vector.shape_cast %30 : vector<1x128xi32> to vector<1x1x128xi32>
    tpu.vector_store %arg5[%c0_11, %c0_12, %c0_13], %33 {strides = array<i32>} : memref<1x1x128xi32, #tpu.memory_space<vmem>>, vector<1x1x128xi32>,
    return
  }
  func.func @transform_0(%arg0: i32, %arg1: i32, %arg2: i32) -> (i32, i32) {
    %c0_i32 = arith.constant 0 : i32
    %c0_i32_0 = arith.constant 0 : i32
    return %c0_i32, %arg1 : i32, i32
  }
  func.func @transform_1(%arg0: i32, %arg1: i32, %arg2: i32) -> (i32, i32) {
    %c1_i32 = arith.constant 1 : i32
    %0 = arith.muli %arg0, %c1_i32 : i32
    %1 = arith.addi %0, %arg2 : i32
    %c0_i32 = arith.constant 0 : i32
    %c0_i32_0 = arith.constant 0 : i32
    return %1, %c0_i32 : i32, i32
  }
  func.func @transform_2(%arg0: i32, %arg1: i32, %arg2: i32) -> (i32, i32, i32) {
    %c0_i32 = arith.constant 0 : i32
    %c0_i32_0 = arith.constant 0 : i32
    return %arg0, %c0_i32, %arg1 : i32, i32, i32
  }
}

</mosaic_0001>

<llo_original>
// kernel: tpu_custom_call.1
$region0: #{tpu_custom_call.1}
  #allocation0 [shape = 'u32[]', space=smem, size = 0x4, offset = 0x4, fixed_abs, tag = 'smem constant byte address 0x4 - core index']
  #allocation1 [shape = 'u32[72,128]{1,0:T(1,128)}', space=vmem, size = 0x9000, scoped, tag = 'internal scratch']
  %s0 = inlined_call_operand.vmem [shape: s32[1,128], index: 0, kind: input, shape index: {}]
  %s1 = inlined_call_operand.vmem [shape: s32[16,1], index: 1, kind: input, shape index: {}]
  %s2 = inlined_call_operand.hbm [shape: s32[1,1,128], index: 2, kind: output, shape index: {}]
  %s3 = sld [smem:[#allocation0]]
  $region22: #{tpu_custom_call.1} parent=0
    _
  %s5 = ssub.s32 1, %s3
  %s6 = scalar_select 0, %s5, %s3
  $region1: #{tpu_custom_call.1} parent=0
    #allocation2 [shape = 'u8[512]{0}', space=vmem, size = 0x400, scoped, tag = 'output window, operand 0, single buffered']
    #allocation3 [shape = 's32[1]{0}', space=sflag, size = 0x4, scoped, tag = 'scoped memory for tpu_custom_call.1']
    %7 = vsyncpa [#allocation3], 0
    // Predicated region
    $region2: #{tpu_custom_call.1} parent=1 // pred_check
      _
    $region3: #{tpu_custom_call.1} parent=1 // pred_check_branch
      %9 = sbr.rel (0) target = $region5
    $region4: #{tpu_custom_call.1} parent=1 // pred_region
      _
    $region5: #{tpu_custom_call.1} parent=1 // pred_fallthru
      _
    // Predicated region
    $region6: #{tpu_custom_call.1} parent=1 // pred_check
      _
    $region7: #{tpu_custom_call.1} parent=1 // pred_check_branch
      %11 = sbr.rel (0) target = $region9
    $region8: #{tpu_custom_call.1} parent=1 // pred_region
      %s12 = sadd.s32 0, 0
      %s13 = smul.u32 2, %s12
      %p14 = scmp.lt.s32.totalorder %s13, 1
      %s15 = scalar_select %p14, %s13, 1
      %s16 = smul.addr %s15, 8
      %s17 = scalar_lea.vmem %s1, %s16
      %s18 = sadd.s32 0, 0
      %s19 = smul.u32 2, %s18
    $region9: #{tpu_custom_call.1} parent=1 // pred_fallthru
      _
    %s20 = sadd.s32 0, 0
    %s21 = smul.u32 2, %s20
    %p22 = scmp.lt.s32.totalorder %s21, 1
    %s23 = scalar_select %p22, %s21, 1
    %s24 = smul.addr %s23, 8
    %s25 = scalar_lea.vmem %s1, %s24
    %s26 = sadd.s32 0, 0
    %s27 = smul.u32 2, %s26
    %p28 = scmp.lt.s32.totalorder %s27, 1
    %s29 = scalar_select %p28, %s27, 1
    %s30 = smul.addr %s29, 8
    %s31 = scalar_lea.vmem %s1, %s30
    %s32 = sadd.s32 0, 0
    %s33 = smul.u32 2, %s32
    %p34 = scmp.eq.s32.totalorder 0, 0
    // Predicated region
    $region10: #{tpu_custom_call.1} parent=1 // pred_check
      %p35 = pneg %p34
    $region11: #{tpu_custom_call.1} parent=1 // pred_check_branch
      %37 = sbr.rel (%p35) target = $region13
    $region12: #{tpu_custom_call.1} parent=1 // pred_region
      %38 = vst [vmem:[#allocation2] sm:$0x1] 4294967295
    $region13: #{tpu_custom_call.1} parent=1 // pred_fallthru
      _
    %v39 = vld [vmem:[%s0] sm:$0x1]
    %v40 = vlaneseq
    %v41 = vshrl.u32 %v40, 7
    %v42 = vadd.s32 %v41, 8
    %s43 = sadd.s32 0, 0
    %s44 = smul.u32 %s43, 16
    %v45 = vld [vmem:[#allocation2] sm:$0x1]
    %v46 = vld [vmem:[%s31] sm:$0xff]
    %v47 = vld [vmem:[%s31 + $0x8] sm:$0xff]
    %48 = vset.pattern.permute.xlu0 0
    %49 = vperm.xlu0 %48, %v46
    %v50 = vpop.permute.xlu0 %49
    %51 = vset.pattern.permute.xlu0 0
    %52 = vperm.xlu0 %51, %v47
    %v53 = vpop.permute.xlu0 %52
    %v54 = vperm.slane %v39, 0
    %vm55 = vcmp.eq.s32.totalorder %v50, %v54
    %vm56 = vcmp.eq.s32.totalorder %v53, %v54
    %v57 = vsel %vm55, %v41, 4294967295
    %v58 = vsel %vm56, %v42, 4294967295
    %vm59 = vcmp.gt.s32.totalorder %v57, %v58
    %v60 = vsel %vm59, %v57, %v58
    %v61 = vrot.slane %v60, 4
    %vm62 = vcmp.gt.s32.totalorder %v60, %v61
    %v63 = vsel %vm62, %v60, %v61
    %v64 = vrot.slane %v63, 2
    %vm65 = vcmp.gt.s32.totalorder %v63, %v64
    %v66 = vsel %vm65, %v63, %v64
    %v67 = vrot.slane %v66, 1
    %vm68 = vcmp.gt.s32.totalorder %v66, %v67
    %v69 = vsel %vm68, %v66, %v67
    %vm70 = vcmp.ge.s32.totalorder %v69, 0
    %s71 = sadd.s32 %s44, 0
    %v72 = vstv %s71
    %v73 = vadd.s32 %v69, %v72
    %v74 = vsel %vm70, %v73, 4294967295
    %vm75 = vcmp.gt.s32.totalorder %v45, %v74
    %v76 = vsel %vm75, %v45, %v74
    %77 = vst [vmem:[#allocation2] sm:$0x1] %v76
    // Predicated region
    $region14: #{tpu_custom_call.1} parent=1 // pred_check
      _
    $region15: #{tpu_custom_call.1} parent=1 // pred_check_branch
      %79 = sbr.rel (0) target = $region17
    $region16: #{tpu_custom_call.1} parent=1 // pred_region
      %81 = vsyncadd [#allocation3], 0
      %s83 = sshll.u32 [#allocation2], 4
      %s84 = int_to_ptr.vmem [resolvable:$true] %s83
      %s85 = sshll.u32 %s2, 4
      %s86 = int_to_ptr.hbm [resolvable:$true] %s85
      %88 = dma.vmem_to_hbm [thread:$0]  %s84, 16, %s86, [#allocation3]
    $region17: #{tpu_custom_call.1} parent=1 // pred_fallthru
      _
    // Predicated region
    $region18: #{tpu_custom_call.1} parent=1 // pred_check
      _
    $region19: #{tpu_custom_call.1} parent=1 // pred_check_branch
      %90 = sbr.rel (0) target = $region21
    $region20: #{tpu_custom_call.1} parent=1 // pred_region
      %92 = dma.done [#allocation3], 16
    $region21: #{tpu_custom_call.1} parent=1 // pred_fallthru
      _
    %93 = vsyncpa [#allocation3], 1

</llo_original>
